<compile_context>
chip_gen: v6e
topology: v6e:2x2x1
jax: 0.10.0
libtpu: 0.0.40
codegen_flags: <defaults>
</compile_context>

<pallas_src>
import jax
import jax.numpy as jnp
from jax.experimental import pallas as pl
from jax.experimental.pallas import tpu as pltpu

LEAKY_SLOPE = 0.01   # PyTorch nn.LeakyReLU default
LN_EPS = 1e-5        # PyTorch nn.LayerNorm default


def _round_up(n, m):
    return ((n + m - 1) // m) * m


def _cdiv(a, b):
    return (a + b - 1) // b


def _leaky_relu(x):
    return jnp.where(x > 0, x, LEAKY_SLOPE * x)


def _layernorm(h, gamma, beta):
    # Single-pass: two independent reductions instead of two dependent ones.
    mean = jnp.mean(h, axis=-1, keepdims=True)
    mean_sq = jnp.mean(h * h, axis=-1, keepdims=True)
    var = jnp.maximum(mean_sq - mean * mean, 0.0)
    return (h - mean) * jax.lax.rsqrt(var + LN_EPS) * gamma + beta


def multitask_kernel(
    x_ref,
    # shared trunk
    w1_ref, b1_ref, g1_ref, bt1_ref,
    w2_ref, b2_ref, g2_ref, bt2_ref,
    # fused heads
    wh1_ref, bh1_ref,      # (64, 96): [emotion | age | country] stage-1
    slope1_ref,            # (1, 96): per-column negative slope (1e-2 / 1e-4)
    wh2_ref, bh2_ref,      # (96, 32): block-diag -> cols 0:10 emo, 10:14 cou, 14:30 age-mid
    wh3_ref, bh3_ref,      # (32, 32): zero except rows 14:30 -> col 14 (age final layer)
    # packed output (TB, 32)
    out_ref,
):
    # x arrives in its original dtype (f32); cast to bf16 only for the MXU operand —
    # no extra HBM pass in the wrapper.
    x = x_ref[...].astype(jnp.bfloat16)                                # (TB, F)

    # ---- shared trunk: Linear(F,128) -> LN -> LeakyReLU -> Linear(128,64) -> LN -> LeakyReLU
    h = jnp.dot(x, w1_ref[...], preferred_element_type=jnp.float32) + b1_ref[...]
    h = _leaky_relu(_layernorm(h, g1_ref[...], bt1_ref[...]))
    h = jnp.dot(h.astype(w2_ref.dtype), w2_ref[...],
                preferred_element_type=jnp.float32) + b2_ref[...]
    h = _leaky_relu(_layernorm(h, g2_ref[...], bt2_ref[...]))          # (TB, 64) f32

    # ---- fused head stage 1: one (64, 96) matmul for [emotion | age | country]
    z1 = jnp.dot(h.astype(wh1_ref.dtype), wh1_ref[...],
                 preferred_element_type=jnp.float32) + bh1_ref[...]    # (TB, 96)
    # Per-column LeakyReLU in a single select: slope 0.01 on emotion/age columns,
    # 0.0001 on country columns (the country head stacks two LeakyReLUs).
    z1 = jnp.where(z1 > 0, z1, z1 * slope1_ref[...])

    # ---- fused head stage 2 (block-diagonal): emotion logits / country logits / age-mid
    z2 = jnp.dot(z1.astype(wh2_ref.dtype), wh2_ref[...],
                 preferred_element_type=jnp.float32) + bh2_ref[...]    # (TB, 32)

    # ---- age final layer (zero-padded weight: only cols 14:30 of leaky(z2) contribute)
    z2_act = _leaky_relu(z2)
    age32 = jnp.dot(z2_act.astype(wh3_ref.dtype), wh3_ref[...],
                    preferred_element_type=jnp.float32) + bh3_ref[...]  # (TB, 32), col 14 = age

    # ---- pack outputs: cols 0:10 sigmoid(emotion), 10:14 country, 14 age
    sig = pl.reciprocal(1.0 + jnp.exp(-z2), approx=False)              # exact; matches torch.sigmoid
    sig = jnp.minimum(sig, 1.0)
    col32 = jax.lax.broadcasted_iota(jnp.int32, z2.shape, 1)
    packed = jnp.where(col32 < 10, sig, jnp.where(col32 < 14, z2, age32))
    out_ref[...] = packed.astype(out_ref.dtype)


def init_params(feat_dimensions, key):
    """Deterministic synthetic parameters with PyTorch-equivalent shapes."""
    ks = jax.random.split(key, 16)

    def lin(k, fan_in, fan_out):
        bound = 1.0 / jnp.sqrt(fan_in)
        kw, kb = jax.random.split(k)
        w = jax.random.uniform(kw, (fan_in, fan_out), jnp.float32, -bound, bound)
        b = jax.random.uniform(kb, (1, fan_out), jnp.float32, -bound, bound)
        return w, b

    p = {}
    # shared trunk
    p["w1"], p["b1"] = lin(ks[0], feat_dimensions, 128)
    p["g1"] = jnp.ones((1, 128), jnp.float32)
    p["bt1"] = jnp.zeros((1, 128), jnp.float32)
    p["w2"], p["b2"] = lin(ks[1], 128, 64)
    p["g2"] = jnp.ones((1, 64), jnp.float32)
    p["bt2"] = jnp.zeros((1, 64), jnp.float32)
    # emotion head
    p["we1"], p["be1"] = lin(ks[2], 64, 32)
    p["we2"], p["be2"] = lin(ks[3], 32, 10)
    # age head
    p["wa1"], p["ba1"] = lin(ks[4], 64, 32)
    p["wa2"], p["ba2"] = lin(ks[5], 32, 16)
    p["wa3"], p["ba3"] = lin(ks[6], 16, 1)
    # country head
    p["wc1"], p["bc1"] = lin(ks[7], 64, 32)
    p["wc2"], p["bc2"] = lin(ks[8], 32, 4)
    # uncertainty weights (returned as-is by forward)
    alpha, beta = 0.33, 0.33
    gamma = round(1.0 - alpha - beta, 2)
    p["logsigma"] = jnp.array([-alpha, -beta, -gamma], jnp.float32)
    return p


def _fuse_params(p, mxu_dtype=jnp.bfloat16):
    """Build fused/packed head weights; bf16 for MXU operands, f32 for adds."""
    f = {}
    f["w1"] = p["w1"].astype(mxu_dtype)
    f["b1"] = p["b1"]
    f["g1"], f["bt1"] = p["g1"], p["bt1"]
    f["w2"] = p["w2"].astype(mxu_dtype)
    f["b2"] = p["b2"]
    f["g2"], f["bt2"] = p["g2"], p["bt2"]

    # stage 1: concat [emotion | age | country] -> (64, 96)
    f["wh1"] = jnp.concatenate([p["we1"], p["wa1"], p["wc1"]], axis=1).astype(mxu_dtype)
    f["bh1"] = jnp.concatenate([p["be1"], p["ba1"], p["bc1"]], axis=1)

    # per-column negative slope for stage-1 activation (country block is double-LeakyReLU)
    f["slope1"] = jnp.concatenate(
        [jnp.full((1, 64), LEAKY_SLOPE, jnp.float32),
         jnp.full((1, 32), LEAKY_SLOPE * LEAKY_SLOPE, jnp.float32)], axis=1)

    # stage 2: block-diagonal (96, 32); cols 0:10 emotion, 10:14 country, 14:30 age-mid
    wh2 = jnp.zeros((96, 32), jnp.float32)
    wh2 = wh2.at[0:32, 0:10].set(p["we2"])
    wh2 = wh2.at[64:96, 10:14].set(p["wc2"])
    wh2 = wh2.at[32:64, 14:30].set(p["wa2"])
    bh2 = jnp.zeros((1, 32), jnp.float32)
    bh2 = bh2.at[:, 0:10].set(p["be2"])
    bh2 = bh2.at[:, 10:14].set(p["bc2"])
    bh2 = bh2.at[:, 14:30].set(p["ba2"])
    f["wh2"] = wh2.astype(mxu_dtype)
    f["bh2"] = bh2

    # stage 3: age Linear(16,1) padded into (32, 32): rows 14:30 -> col 14
    wh3 = jnp.zeros((32, 32), jnp.float32)
    wh3 = wh3.at[14:30, 14:15].set(p["wa3"])
    bh3 = jnp.zeros((1, 32), jnp.float32)
    bh3 = bh3.at[:, 14:15].set(p["ba3"])
    f["wh3"] = wh3.astype(mxu_dtype)
    f["bh3"] = bh3
    return f


_PARAM_ORDER = ["w1", "b1", "g1", "bt1", "w2", "b2", "g2", "bt2",
                "wh1", "bh1", "slope1", "wh2", "bh2", "wh3", "bh3"]


def _choose_tiling(pB, F, x_itemsize):
    """Pick the batch tile TB and a VMEM limit per TPU generation."""
    try:
        vmem_cap = int(pltpu.get_tpu_info().vmem_capacity_bytes)
    except Exception:
        vmem_cap = 64 * 1024 * 1024   # conservative fallback (v7x per-core VMEM)

    weights_bytes = (F * 128 + 128 * 64 + 64 * 96 + 96 * 32 + 32 * 32) * 2 + 64 * 1024

    def need(tb):
        x_buf = 2 * tb * F * x_itemsize            # double-buffered x tile
        out_buf = 2 * tb * 32 * 4                  # double-buffered packed output
        act = tb * (128 + 96 + 64 + 6 * 32) * 4    # f32 intermediates (upper bound)
        return x_buf + out_buf + act + weights_bytes

    # Aim for a ~4 MiB x tile so the ~0.35 us per-grid-step overhead is amortized.
    tb = max(8, ((4 * 1024 * 1024) // (F * x_itemsize)) // 8 * 8)
    tb = min(tb, 4096)
    tb = min(tb, pB)                               # pB is already a multiple of 8
    # Leave >= 2 tiles so v7x's two TensorCores both get work on the parallel axis.
    if pB >= 16:
        tb = min(tb, _round_up(_cdiv(pB, 2), 8))
    tb = max(tb, 8)

    budget = max(int(vmem_cap * 0.6), 8 * 1024 * 1024)
    while tb > 8 and need(tb) > budget:
        tb = max(8, (tb // 2 // 8) * 8)

    vmem_limit = int(min(max(32 * 1024 * 1024, need(tb) + 8 * 1024 * 1024),
                         int(vmem_cap * 0.9)))
    return tb, vmem_limit


def multitask_forward(x, params):
    """Pallas-backed equivalent of MultiTask.forward.

    Returns ([emotion, country, age], logsigma).
    """
    B = x.shape[0]
    x2d = x.reshape(B, -1)                         # nn.Flatten()
    F = x2d.shape[1]

    # Only pad when the batch is not sublane-aligned (rare; keeps the common path free
    # of any extra HBM round trip).  The last grid tile may be ragged w.r.t. TB — all
    # ops are row-independent and we slice [:B] below, so garbage rows are harmless.
    pB = _round_up(B, 8)
    if pB != B:
        x2d = jnp.pad(x2d, ((0, pB - B), (0, 0)))

    TB, vmem_limit = _choose_tiling(pB, F, x2d.dtype.itemsize)
    grid = _cdiv(pB, TB)

    fused = _fuse_params(params)
    weight_args = [fused[k] for k in _PARAM_ORDER]

    in_specs = [pl.BlockSpec((TB, F), lambda i: (i, 0))]
    # Constant index_map -> weights fetched once, stay VMEM-resident across the grid.
    in_specs += [pl.BlockSpec(w.shape, lambda i: (0, 0)) for w in weight_args]

    packed = pl.pallas_call(
        multitask_kernel,
        out_shape=jax.ShapeDtypeStruct((pB, 32), jnp.float32),
        grid=(grid,),
        in_specs=in_specs,
        out_specs=pl.BlockSpec((TB, 32), lambda i: (i, 0)),
        compiler_params=pltpu.CompilerParams(
            dimension_semantics=("parallel",),      # split grid across v7x's 2 TCs
            vmem_limit_bytes=vmem_limit,
        ),
    )(x2d, *weight_args)

    emotion = packed[:B, 0:10]
    country = packed[:B, 10:14]
    age = packed[:B, 14:15]
    return [emotion, country, age], params["logsigma"]


def multitask_reference(x, p):
    """Pure-JAX f32 reference mirroring the PyTorch module (for tolerance checks)."""
    x2d = x.reshape(x.shape[0], -1)

    def ln(h, g, b):
        mu = jnp.mean(h, -1, keepdims=True)
        var = jnp.mean((h - mu) ** 2, -1, keepdims=True)
        return (h - mu) / jnp.sqrt(var + LN_EPS) * g + b

    def leaky(v):
        return jnp.where(v > 0, v, LEAKY_SLOPE * v)

    h = leaky(ln(x2d @ p["w1"] + p["b1"], p["g1"], p["bt1"]))
    h = leaky(ln(h @ p["w2"] + p["b2"], p["g2"], p["bt2"]))
    emo = jax.nn.sigmoid(leaky(h @ p["we1"] + p["be1"]) @ p["we2"] + p["be2"])
    age = leaky(leaky(h @ p["wa1"] + p["ba1"]) @ p["wa2"] + p["ba2"]) @ p["wa3"] + p["ba3"]
    cou = leaky(leaky(h @ p["wc1"] + p["bc1"])) @ p["wc2"] + p["bc2"]
    return emo, cou, age


if __name__ == "__main__":
    feat_dimensions = 256
    batch = 4

    key = jax.random.PRNGKey(0)
    kx, kp = jax.random.split(key)
    x = jax.random.normal(kx, (batch, feat_dimensions), jnp.float32)
    params = init_params(feat_dimensions, kp)

    (emotion, country, age), logsigma = multitask_forward(x, params)
    jax.block_until_ready((emotion, country, age, logsigma))

    assert emotion.shape == (batch, 10)
    assert country.shape == (batch, 4)
    assert age.shape == (batch, 1)
    assert logsigma.shape == (3,)
    assert bool(jnp.all(jnp.isfinite(emotion)))
    assert bool(jnp.all(jnp.isfinite(country)))
    assert bool(jnp.all(jnp.isfinite(age)))
    assert bool(jnp.all((emotion >= 0.0) & (emotion <= 1.0)))

    # Loose-tolerance parity check vs. the f32 reference (kernel uses bf16 MXU weights).
    emo_ref, cou_ref, age_ref = multitask_reference(x, params)
    assert bool(jnp.allclose(emotion, emo_ref, atol=1e-1, rtol=1e-1))
    assert bool(jnp.allclose(country, cou_ref, atol=1e-1, rtol=1e-1))
    assert bool(jnp.allclose(age, age_ref, atol=1e-1, rtol=1e-1))

    print("KERNEL_OK")
</pallas_src>

<mosaic_0001>
module attributes {stable_mosaic.version = 11 : i64} {
  func.func @multitask_kernel(%arg0: i32, %arg1: memref<8x256xf32, #tpu.memory_space<vmem>>, %arg2: memref<256x128xbf16, #tpu.memory_space<vmem>>, %arg3: memref<1x128xf32, #tpu.memory_space<vmem>>, %arg4: memref<1x128xf32, #tpu.memory_space<vmem>>, %arg5: memref<1x128xf32, #tpu.memory_space<vmem>>, %arg6: memref<128x64xbf16, #tpu.memory_space<vmem>>, %arg7: memref<1x64xf32, #tpu.memory_space<vmem>>, %arg8: memref<1x64xf32, #tpu.memory_space<vmem>>, %arg9: memref<1x64xf32, #tpu.memory_space<vmem>>, %arg10: memref<64x96xbf16, #tpu.memory_space<vmem>>, %arg11: memref<1x96xf32, #tpu.memory_space<vmem>>, %arg12: memref<1x96xf32, #tpu.memory_space<vmem>>, %arg13: memref<96x32xbf16, #tpu.memory_space<vmem>>, %arg14: memref<1x32xf32, #tpu.memory_space<vmem>>, %arg15: memref<32x32xbf16, #tpu.memory_space<vmem>>, %arg16: memref<1x32xf32, #tpu.memory_space<vmem>>, %arg17: memref<8x32xf32, #tpu.memory_space<vmem>>) attributes {dimension_semantics = [#tpu.dimension_semantics<parallel>], iteration_bounds = array<i64: 1>, scalar_prefetch = 0 : i64, scratch_operands = 0 : i64, tpu.core_type = #tpu.core_type<tc>, window_params = [{transform_indices = @transform_0, window_bounds = array<i64: 8, 256>}, {pipeline_mode = #tpu.pipeline_mode<synchronous>, transform_indices = @transform_1, window_bounds = array<i64: 256, 128>}, {pipeline_mode = #tpu.pipeline_mode<synchronous>, transform_indices = @transform_2, window_bounds = array<i64: 1, 128>}, {pipeline_mode = #tpu.pipeline_mode<synchronous>, transform_indices = @transform_3, window_bounds = array<i64: 1, 128>}, {pipeline_mode = #tpu.pipeline_mode<synchronous>, transform_indices = @transform_4, window_bounds = array<i64: 1, 128>}, {pipeline_mode = #tpu.pipeline_mode<synchronous>, transform_indices = @transform_5, window_bounds = array<i64: 128, 64>}, {pipeline_mode = #tpu.pipeline_mode<synchronous>, transform_indices = @transform_6, window_bounds = array<i64: 1, 64>}, {pipeline_mode = #tpu.pipeline_mode<synchronous>, transform_indices = @transform_7, window_bounds = array<i64: 1, 64>}, {pipeline_mode = #tpu.pipeline_mode<synchronous>, transform_indices = @transform_8, window_bounds = array<i64: 1, 64>}, {pipeline_mode = #tpu.pipeline_mode<synchronous>, transform_indices = @transform_9, window_bounds = array<i64: 64, 96>}, {pipeline_mode = #tpu.pipeline_mode<synchronous>, transform_indices = @transform_10, window_bounds = array<i64: 1, 96>}, {pipeline_mode = #tpu.pipeline_mode<synchronous>, transform_indices = @transform_11, window_bounds = array<i64: 1, 96>}, {pipeline_mode = #tpu.pipeline_mode<synchronous>, transform_indices = @transform_12, window_bounds = array<i64: 96, 32>}, {pipeline_mode = #tpu.pipeline_mode<synchronous>, transform_indices = @transform_13, window_bounds = array<i64: 1, 32>}, {pipeline_mode = #tpu.pipeline_mode<synchronous>, transform_indices = @transform_14, window_bounds = array<i64: 32, 32>}, {pipeline_mode = #tpu.pipeline_mode<synchronous>, transform_indices = @transform_15, window_bounds = array<i64: 1, 32>}, {transform_indices = @transform_16, window_bounds = array<i64: 8, 32>}]} {
    %c0 = arith.constant 0 : index
    %c0_0 = arith.constant 0 : index
    %0 = vector.load %arg1[%c0, %c0_0] : memref<8x256xf32, #tpu.memory_space<vmem>>, vector<8x256xf32>
    %1 = arith.truncf %0 : vector<8x256xf32> to vector<8x256xbf16>
    %c0_1 = arith.constant 0 : index
    %c0_2 = arith.constant 0 : index
    %2 = vector.load %arg2[%c0_1, %c0_2] : memref<256x128xbf16, #tpu.memory_space<vmem>>, vector<256x128xbf16>
    %cst = arith.constant dense<0.000000e+00> : vector<8x128xf32>
    %3 = tpu.matmul %1, %2, %cst {dimension_numbers = #tpu.dot_dimension_numbers<[1], [0], [0], [1], [0, 0, 1, 1], [], []>} : vector<8x256xbf16>, vector<256x128xbf16>, vector<8x128xf32> -> vector<8x128xf32>
    %c0_3 = arith.constant 0 : index
    %c0_4 = arith.constant 0 : index
    %4 = vector.load %arg3[%c0_3, %c0_4] : memref<1x128xf32, #tpu.memory_space<vmem>>, vector<1x128xf32>
    %5 = vector.broadcast %4 : vector<1x128xf32> to vector<8x128xf32>
    %6 = arith.addf %3, %5 : vector<8x128xf32>
    %c0_5 = arith.constant 0 : index
    %c0_6 = arith.constant 0 : index
    %7 = vector.load %arg4[%c0_5, %c0_6] : memref<1x128xf32, #tpu.memory_space<vmem>>, vector<1x128xf32>
    %c0_7 = arith.constant 0 : index
    %c0_8 = arith.constant 0 : index
    %8 = vector.load %arg5[%c0_7, %c0_8] : memref<1x128xf32, #tpu.memory_space<vmem>>, vector<1x128xf32>
    %cst_9 = arith.constant dense<0.000000e+00> : vector<8xf32>
    %9 = vector.multi_reduction <add>, %6, %cst_9 [1] : vector<8x128xf32> to vector<8xf32>
    %10 = vector.shape_cast %9 : vector<8xf32> to vector<8x1xf32>
    %cst_10 = arith.constant 1.280000e+02 : f32
    %11 = vector.broadcast %cst_10 : f32 to vector<8x1xf32>
    %12 = arith.divf %10, %11 : vector<8x1xf32>
    %13 = arith.mulf %6, %6 : vector<8x128xf32>
    %cst_11 = arith.constant dense<0.000000e+00> : vector<8xf32>
    %14 = vector.multi_reduction <add>, %13, %cst_11 [1] : vector<8x128xf32> to vector<8xf32>
    %15 = vector.shape_cast %14 : vector<8xf32> to vector<8x1xf32>
    %cst_12 = arith.constant 1.280000e+02 : f32
    %16 = vector.broadcast %cst_12 : f32 to vector<8x1xf32>
    %17 = arith.divf %15, %16 : vector<8x1xf32>
    %18 = arith.mulf %12, %12 : vector<8x1xf32>
    %19 = arith.subf %17, %18 : vector<8x1xf32>
    %cst_13 = arith.constant 0.000000e+00 : f32
    %20 = vector.broadcast %cst_13 : f32 to vector<8x1xf32>
    %21 = arith.maximumf %19, %20 : vector<8x1xf32>
    %22 = vector.broadcast %12 : vector<8x1xf32> to vector<8x128xf32>
    %23 = arith.subf %6, %22 : vector<8x128xf32>
    %cst_14 = arith.constant 9.99999974E-6 : f32
    %24 = vector.broadcast %cst_14 : f32 to vector<8x1xf32>
    %25 = arith.addf %21, %24 : vector<8x1xf32>
    %26 = math.rsqrt %25 : vector<8x1xf32>
    %27 = vector.broadcast %26 : vector<8x1xf32> to vector<8x128xf32>
    %28 = arith.mulf %23, %27 : vector<8x128xf32>
    %29 = vector.broadcast %7 : vector<1x128xf32> to vector<8x128xf32>
    %30 = arith.mulf %28, %29 : vector<8x128xf32>
    %31 = vector.broadcast %8 : vector<1x128xf32> to vector<8x128xf32>
    %32 = arith.addf %30, %31 : vector<8x128xf32>
    %cst_15 = arith.constant 0.000000e+00 : f32
    %33 = vector.broadcast %cst_15 : f32 to vector<8x128xf32>
    %34 = arith.cmpf ogt, %32, %33 : vector<8x128xf32>
    %cst_16 = arith.constant 0.00999999977 : f32
    %35 = vector.broadcast %cst_16 : f32 to vector<8x128xf32>
    %36 = arith.mulf %35, %32 : vector<8x128xf32>
    %37 = arith.select %34, %32, %36 : vector<8x128xi1>, vector<8x128xf32>
    %38 = arith.truncf %37 : vector<8x128xf32> to vector<8x128xbf16>
    %c0_17 = arith.constant 0 : index
    %c0_18 = arith.constant 0 : index
    %39 = vector.load %arg6[%c0_17, %c0_18] : memref<128x64xbf16, #tpu.memory_space<vmem>>, vector<128x64xbf16>
    %cst_19 = arith.constant dense<0.000000e+00> : vector<8x64xf32>
    %40 = tpu.matmul %38, %39, %cst_19 {dimension_numbers = #tpu.dot_dimension_numbers<[1], [0], [0], [1], [0, 0, 1, 1], [], []>} : vector<8x128xbf16>, vector<128x64xbf16>, vector<8x64xf32> -> vector<8x64xf32>
    %c0_20 = arith.constant 0 : index
    %c0_21 = arith.constant 0 : index
    %41 = vector.load %arg7[%c0_20, %c0_21] : memref<1x64xf32, #tpu.memory_space<vmem>>, vector<1x64xf32>
    %42 = vector.broadcast %41 : vector<1x64xf32> to vector<8x64xf32>
    %43 = arith.addf %40, %42 : vector<8x64xf32>
    %c0_22 = arith.constant 0 : index
    %c0_23 = arith.constant 0 : index
    %44 = vector.load %arg8[%c0_22, %c0_23] : memref<1x64xf32, #tpu.memory_space<vmem>>, vector<1x64xf32>
    %c0_24 = arith.constant 0 : index
    %c0_25 = arith.constant 0 : index
    %45 = vector.load %arg9[%c0_24, %c0_25] : memref<1x64xf32, #tpu.memory_space<vmem>>, vector<1x64xf32>
    %cst_26 = arith.constant dense<0.000000e+00> : vector<8xf32>
    %46 = vector.multi_reduction <add>, %43, %cst_26 [1] : vector<8x64xf32> to vector<8xf32>
    %47 = vector.shape_cast %46 : vector<8xf32> to vector<8x1xf32>
    %cst_27 = arith.constant 6.400000e+01 : f32
    %48 = vector.broadcast %cst_27 : f32 to vector<8x1xf32>
    %49 = arith.divf %47, %48 : vector<8x1xf32>
    %50 = arith.mulf %43, %43 : vector<8x64xf32>
    %cst_28 = arith.constant dense<0.000000e+00> : vector<8xf32>
    %51 = vector.multi_reduction <add>, %50, %cst_28 [1] : vector<8x64xf32> to vector<8xf32>
    %52 = vector.shape_cast %51 : vector<8xf32> to vector<8x1xf32>
    %cst_29 = arith.constant 6.400000e+01 : f32
    %53 = vector.broadcast %cst_29 : f32 to vector<8x1xf32>
    %54 = arith.divf %52, %53 : vector<8x1xf32>
    %55 = arith.mulf %49, %49 : vector<8x1xf32>
    %56 = arith.subf %54, %55 : vector<8x1xf32>
    %cst_30 = arith.constant 0.000000e+00 : f32
    %57 = vector.broadcast %cst_30 : f32 to vector<8x1xf32>
    %58 = arith.maximumf %56, %57 : vector<8x1xf32>
    %59 = vector.broadcast %49 : vector<8x1xf32> to vector<8x64xf32>
    %60 = arith.subf %43, %59 : vector<8x64xf32>
    %cst_31 = arith.constant 9.99999974E-6 : f32
    %61 = vector.broadcast %cst_31 : f32 to vector<8x1xf32>
    %62 = arith.addf %58, %61 : vector<8x1xf32>
    %63 = math.rsqrt %62 : vector<8x1xf32>
    %64 = vector.broadcast %63 : vector<8x1xf32> to vector<8x64xf32>
    %65 = arith.mulf %60, %64 : vector<8x64xf32>
    %66 = vector.broadcast %44 : vector<1x64xf32> to vector<8x64xf32>
    %67 = arith.mulf %65, %66 : vector<8x64xf32>
    %68 = vector.broadcast %45 : vector<1x64xf32> to vector<8x64xf32>
    %69 = arith.addf %67, %68 : vector<8x64xf32>
    %cst_32 = arith.constant 0.000000e+00 : f32
    %70 = vector.broadcast %cst_32 : f32 to vector<8x64xf32>
    %71 = arith.cmpf ogt, %69, %70 : vector<8x64xf32>
    %cst_33 = arith.constant 0.00999999977 : f32
    %72 = vector.broadcast %cst_33 : f32 to vector<8x64xf32>
    %73 = arith.mulf %72, %69 : vector<8x64xf32>
    %74 = arith.select %71, %69, %73 : vector<8x64xi1>, vector<8x64xf32>
    %75 = arith.truncf %74 : vector<8x64xf32> to vector<8x64xbf16>
    %c0_34 = arith.constant 0 : index
    %c0_35 = arith.constant 0 : index
    %76 = vector.load %arg10[%c0_34, %c0_35] : memref<64x96xbf16, #tpu.memory_space<vmem>>, vector<64x96xbf16>
    %cst_36 = arith.constant dense<0.000000e+00> : vector<8x96xf32>
    %77 = tpu.matmul %75, %76, %cst_36 {dimension_numbers = #tpu.dot_dimension_numbers<[1], [0], [0], [1], [0, 0, 1, 1], [], []>} : vector<8x64xbf16>, vector<64x96xbf16>, vector<8x96xf32> -> vector<8x96xf32>
    %c0_37 = arith.constant 0 : index
    %c0_38 = arith.constant 0 : index
    %78 = vector.load %arg11[%c0_37, %c0_38] : memref<1x96xf32, #tpu.memory_space<vmem>>, vector<1x96xf32>
    %79 = vector.broadcast %78 : vector<1x96xf32> to vector<8x96xf32>
    %80 = arith.addf %77, %79 : vector<8x96xf32>
    %cst_39 = arith.constant 0.000000e+00 : f32
    %81 = vector.broadcast %cst_39 : f32 to vector<8x96xf32>
    %82 = arith.cmpf ogt, %80, %81 : vector<8x96xf32>
    %c0_40 = arith.constant 0 : index
    %c0_41 = arith.constant 0 : index
    %83 = vector.load %arg12[%c0_40, %c0_41] : memref<1x96xf32, #tpu.memory_space<vmem>>, vector<1x96xf32>
    %84 = vector.broadcast %83 : vector<1x96xf32> to vector<8x96xf32>
    %85 = arith.mulf %80, %84 : vector<8x96xf32>
    %86 = arith.select %82, %80, %85 : vector<8x96xi1>, vector<8x96xf32>
    %87 = arith.truncf %86 : vector<8x96xf32> to vector<8x96xbf16>
    %c0_42 = arith.constant 0 : index
    %c0_43 = arith.constant 0 : index
    %88 = vector.load %arg13[%c0_42, %c0_43] : memref<96x32xbf16, #tpu.memory_space<vmem>>, vector<96x32xbf16>
    %cst_44 = arith.constant dense<0.000000e+00> : vector<8x32xf32>
    %89 = tpu.matmul %87, %88, %cst_44 {dimension_numbers = #tpu.dot_dimension_numbers<[1], [0], [0], [1], [0, 0, 1, 1], [], []>} : vector<8x96xbf16>, vector<96x32xbf16>, vector<8x32xf32> -> vector<8x32xf32>
    %c0_45 = arith.constant 0 : index
    %c0_46 = arith.constant 0 : index
    %90 = vector.load %arg14[%c0_45, %c0_46] : memref<1x32xf32, #tpu.memory_space<vmem>>, vector<1x32xf32>
    %91 = vector.broadcast %90 : vector<1x32xf32> to vector<8x32xf32>
    %92 = arith.addf %89, %91 : vector<8x32xf32>
    %cst_47 = arith.constant 0.000000e+00 : f32
    %93 = vector.broadcast %cst_47 : f32 to vector<8x32xf32>
    %94 = arith.cmpf ogt, %92, %93 : vector<8x32xf32>
    %cst_48 = arith.constant 0.00999999977 : f32
    %95 = vector.broadcast %cst_48 : f32 to vector<8x32xf32>
    %96 = arith.mulf %95, %92 : vector<8x32xf32>
    %97 = arith.select %94, %92, %96 : vector<8x32xi1>, vector<8x32xf32>
    %98 = arith.truncf %97 : vector<8x32xf32> to vector<8x32xbf16>
    %c0_49 = arith.constant 0 : index
    %c0_50 = arith.constant 0 : index
    %99 = vector.load %arg15[%c0_49, %c0_50] : memref<32x32xbf16, #tpu.memory_space<vmem>>, vector<32x32xbf16>
    %cst_51 = arith.constant dense<0.000000e+00> : vector<8x32xf32>
    %100 = tpu.matmul %98, %99, %cst_51 {dimension_numbers = #tpu.dot_dimension_numbers<[1], [0], [0], [1], [0, 0, 1, 1], [], []>} : vector<8x32xbf16>, vector<32x32xbf16>, vector<8x32xf32> -> vector<8x32xf32>
    %c0_52 = arith.constant 0 : index
    %c0_53 = arith.constant 0 : index
    %101 = vector.load %arg16[%c0_52, %c0_53] : memref<1x32xf32, #tpu.memory_space<vmem>>, vector<1x32xf32>
    %102 = vector.broadcast %101 : vector<1x32xf32> to vector<8x32xf32>
    %103 = arith.addf %100, %102 : vector<8x32xf32>
    %cst_54 = arith.constant 0.000000e+00 : f32
    %104 = vector.broadcast %cst_54 : f32 to vector<8x32xf32>
    %105 = arith.subf %104, %92 : vector<8x32xf32>
    %106 = math.exp %105 : vector<8x32xf32>
    %cst_55 = arith.constant 1.000000e+00 : f32
    %107 = vector.broadcast %cst_55 : f32 to vector<8x32xf32>
    %108 = arith.addf %107, %106 : vector<8x32xf32>
    %109 = tpu.reciprocal %108 : vector<8x32xf32> -> vector<8x32xf32>
    %cst_56 = arith.constant 1.000000e+00 : f32
    %110 = vector.broadcast %cst_56 : f32 to vector<8x32xf32>
    %111 = arith.minimumf %109, %110 : vector<8x32xf32>
    %112 = tpu.iota {dimensions = array<i32: 1>} : vector<8x32xi32>
    %c10_i32 = arith.constant 10 : i32
    %113 = vector.broadcast %c10_i32 : i32 to vector<8x32xi32>
    %114 = arith.cmpi slt, %112, %113 : vector<8x32xi32>
    %c14_i32 = arith.constant 14 : i32
    %115 = vector.broadcast %c14_i32 : i32 to vector<8x32xi32>
    %116 = arith.cmpi slt, %112, %115 : vector<8x32xi32>
    %117 = arith.select %116, %92, %103 : vector<8x32xi1>, vector<8x32xf32>
    %118 = arith.select %114, %111, %117 : vector<8x32xi1>, vector<8x32xf32>
    %c0_57 = arith.constant 0 : index
    %c0_58 = arith.constant 0 : index
    %119 = vector.load %arg17[%c0_57, %c0_58] : memref<8x32xf32, #tpu.memory_space<vmem>>, vector<8x32xf32>
    tpu.vector_store %arg17[%c0_57, %c0_58], %118 {strides = array<i32>} : memref<8x32xf32, #tpu.memory_space<vmem>>, vector<8x32xf32>,
    return
  }
  func.func @transform_0(%arg0: i32) -> (i32, i32) {
    %c0_i32 = arith.constant 0 : i32
    %c0_i32_0 = arith.constant 0 : i32
    return %arg0, %c0_i32 : i32, i32
  }
  func.func @transform_1(%arg0: i32) -> (i32, i32) {
    %c0_i32 = arith.constant 0 : i32
    %c0_i32_0 = arith.constant 0 : i32
    %c0_i32_1 = arith.constant 0 : i32
    return %c0_i32, %c0_i32_0 : i32, i32
  }
  func.func @transform_2(%arg0: i32) -> (i32, i32) {
    %c0_i32 = arith.constant 0 : i32
    %c0_i32_0 = arith.constant 0 : i32
    %c0_i32_1 = arith.constant 0 : i32
    return %c0_i32, %c0_i32_0 : i32, i32
  }
  func.func @transform_3(%arg0: i32) -> (i32, i32) {
    %c0_i32 = arith.constant 0 : i32
    %c0_i32_0 = arith.constant 0 : i32
    %c0_i32_1 = arith.constant 0 : i32
    return %c0_i32, %c0_i32_0 : i32, i32
  }
  func.func @transform_4(%arg0: i32) -> (i32, i32) {
    %c0_i32 = arith.constant 0 : i32
    %c0_i32_0 = arith.constant 0 : i32
    %c0_i32_1 = arith.constant 0 : i32
    return %c0_i32, %c0_i32_0 : i32, i32
  }
  func.func @transform_5(%arg0: i32) -> (i32, i32) {
    %c0_i32 = arith.constant 0 : i32
    %c0_i32_0 = arith.constant 0 : i32
    %c0_i32_1 = arith.constant 0 : i32
    return %c0_i32, %c0_i32_0 : i32, i32
  }
  func.func @transform_6(%arg0: i32) -> (i32, i32) {
    %c0_i32 = arith.constant 0 : i32
    %c0_i32_0 = arith.constant 0 : i32
    %c0_i32_1 = arith.constant 0 : i32
    return %c0_i32, %c0_i32_0 : i32, i32
  }
  func.func @transform_7(%arg0: i32) -> (i32, i32) {
    %c0_i32 = arith.constant 0 : i32
    %c0_i32_0 = arith.constant 0 : i32
    %c0_i32_1 = arith.constant 0 : i32
    return %c0_i32, %c0_i32_0 : i32, i32
  }
  func.func @transform_8(%arg0: i32) -> (i32, i32) {
    %c0_i32 = arith.constant 0 : i32
    %c0_i32_0 = arith.constant 0 : i32
    %c0_i32_1 = arith.constant 0 : i32
    return %c0_i32, %c0_i32_0 : i32, i32
  }
  func.func @transform_9(%arg0: i32) -> (i32, i32) {
    %c0_i32 = arith.constant 0 : i32
    %c0_i32_0 = arith.constant 0 : i32
    %c0_i32_1 = arith.constant 0 : i32
    return %c0_i32, %c0_i32_0 : i32, i32
  }
  func.func @transform_10(%arg0: i32) -> (i32, i32) {
    %c0_i32 = arith.constant 0 : i32
    %c0_i32_0 = arith.constant 0 : i32
    %c0_i32_1 = arith.constant 0 : i32
    return %c0_i32, %c0_i32_0 : i32, i32
  }
  func.func @transform_11(%arg0: i32) -> (i32, i32) {
    %c0_i32 = arith.constant 0 : i32
    %c0_i32_0 = arith.constant 0 : i32
    %c0_i32_1 = arith.constant 0 : i32
    return %c0_i32, %c0_i32_0 : i32, i32
  }
  func.func @transform_12(%arg0: i32) -> (i32, i32) {
    %c0_i32 = arith.constant 0 : i32
    %c0_i32_0 = arith.constant 0 : i32
    %c0_i32_1 = arith.constant 0 : i32
    return %c0_i32, %c0_i32_0 : i32, i32
  }
  func.func @transform_13(%arg0: i32) -> (i32, i32) {
    %c0_i32 = arith.constant 0 : i32
    %c0_i32_0 = arith.constant 0 : i32
    %c0_i32_1 = arith.constant 0 : i32
    return %c0_i32, %c0_i32_0 : i32, i32
  }
  func.func @transform_14(%arg0: i32) -> (i32, i32) {
    %c0_i32 = arith.constant 0 : i32
    %c0_i32_0 = arith.constant 0 : i32
    %c0_i32_1 = arith.constant 0 : i32
    return %c0_i32, %c0_i32_0 : i32, i32
  }
  func.func @transform_15(%arg0: i32) -> (i32, i32) {
    %c0_i32 = arith.constant 0 : i32
    %c0_i32_0 = arith.constant 0 : i32
    %c0_i32_1 = arith.constant 0 : i32
    return %c0_i32, %c0_i32_0 : i32, i32
  }
  func.func @transform_16(%arg0: i32) -> (i32, i32) {
    %c0_i32 = arith.constant 0 : i32
    %c0_i32_0 = arith.constant 0 : i32
    return %arg0, %c0_i32 : i32, i32
  }
}

</mosaic_0001>

<llo_original>
// kernel: tpu_custom_call.1
$region0: #{tpu_custom_call.1}
  #allocation0 [shape = 'u32[]', space=smem, size = 0x4, offset = 0x4, fixed_abs, tag = 'smem constant byte address 0x4 - core index']
  #allocation1 [shape = 'u32[144,128]{1,0:T(1,128)}', space=vmem, size = 0x12000, scoped, tag = 'internal scratch']
  %s0 = inlined_call_operand.hbm [shape: f32[8,256], index: 0, kind: input, shape index: {}]
  %s1 = inlined_call_operand.vmem [shape: bf16[256,128], index: 1, kind: input, shape index: {}]
  %s2 = inlined_call_operand.vmem [shape: f32[1,128], index: 2, kind: input, shape index: {}]
  %s3 = inlined_call_operand.vmem [shape: f32[1,128], index: 3, kind: input, shape index: {}]
  %s4 = inlined_call_operand.vmem [shape: f32[1,128], index: 4, kind: input, shape index: {}]
  %s5 = inlined_call_operand.vmem [shape: bf16[128,64], index: 5, kind: input, shape index: {}]
  %s6 = inlined_call_operand.vmem [shape: f32[1,64], index: 6, kind: input, shape index: {}]
  %s7 = inlined_call_operand.vmem [shape: f32[1,64], index: 7, kind: input, shape index: {}]
  %s8 = inlined_call_operand.hbm [shape: f32[1,64], index: 8, kind: input, shape index: {}]
  %s9 = inlined_call_operand.vmem [shape: bf16[64,96], index: 9, kind: input, shape index: {}]
  %s10 = inlined_call_operand.hbm [shape: f32[1,96], index: 10, kind: input, shape index: {}]
  %s11 = inlined_call_operand.hbm [shape: f32[1,96], index: 11, kind: input, shape index: {}]
  %s12 = inlined_call_operand.vmem [shape: bf16[96,32], index: 12, kind: input, shape index: {}]
  %s13 = inlined_call_operand.hbm [shape: f32[1,32], index: 13, kind: input, shape index: {}]
  %s14 = inlined_call_operand.hbm [shape: bf16[32,32], index: 14, kind: input, shape index: {}]
  %s15 = inlined_call_operand.vmem [shape: f32[1,32], index: 15, kind: input, shape index: {}]
  %s16 = inlined_call_operand.hbm [shape: f32[8,32], index: 16, kind: output, shape index: {}]
  %s17 = sld [smem:[#allocation0]]
  $region98: #{tpu_custom_call.1} parent=0
    _
  %s19 = ssub.s32 1, %s17
  %s20 = scalar_select 0, %s19, %s17
  $region1: #{tpu_custom_call.1} parent=0
    #allocation2 [shape = 'u8[8192]{0}', space=vmem, size = 0x2000, scoped, tag = 'input window, operand 0, single buffered']
    #allocation3 [shape = 's32[1]{0}', space=sflag, size = 0x4, scoped, tag = 'scoped memory for tpu_custom_call.1']
    #allocation4 [shape = 's32[1]{0}', space=sflag, size = 0x4, scoped, tag = 'scoped memory for tpu_custom_call.1']
    #allocation5 [shape = 'u8[512]{0}', space=vmem, size = 0x400, scoped, tag = 'input window, operand 8, single buffered']
    #allocation6 [shape = 's32[1]{0}', space=sflag, size = 0x4, scoped, tag = 'scoped memory for tpu_custom_call.1']
    #allocation7 [shape = 'u8[512]{0}', space=vmem, size = 0x400, scoped, tag = 'input window, operand 10, single buffered']
    #allocation8 [shape = 'u8[512]{0}', space=vmem, size = 0x400, scoped, tag = 'input window, operand 11, single buffered']
    #allocation9 [shape = 's32[1]{0}', space=sflag, size = 0x4, scoped, tag = 'scoped memory for tpu_custom_call.1']
    #allocation10 [shape = 'u8[512]{0}', space=vmem, size = 0x400, scoped, tag = 'input window, operand 13, single buffered']
    #allocation11 [shape = 'u8[8192]{0}', space=vmem, size = 0x2000, scoped, tag = 'input window, operand 14, single buffered']
    #allocation12 [shape = 's32[1]{0}', space=sflag, size = 0x4, scoped, tag = 'scoped memory for tpu_custom_call.1']
    #allocation13 [shape = 'u8[4096]{0}', space=vmem, size = 0x1000, scoped, tag = 'output window, operand 0, single buffered']
    %21 = vsyncpa [#allocation3], 0
    %22 = vsyncpa [#allocation6], 0
    %23 = vsyncpa [#allocation9], 0
    %24 = vsyncpa [#allocation12], 0
    %25 = vsyncpa [#allocation4], 0
    // Predicated region
    $region2: #{tpu_custom_call.1} parent=1 // pred_check
      _
    $region3: #{tpu_custom_call.1} parent=1 // pred_check_branch
      %27 = sbr.rel (0) target = $region5
    $region4: #{tpu_custom_call.1} parent=1 // pred_region
      %s29 = ssub.s32 256, 256
      %30 = vsyncadd [#allocation3], %s29
      %s32 = sshll.u32 [#allocation2], 4
      %s33 = int_to_ptr.vmem [resolvable:$true] %s32
      %35 = dma.hbm_to_vmem [thread:$0]  %s0, 256, %s33, [#allocation3]
    $region5: #{tpu_custom_call.1} parent=1 // pred_fallthru
      _
    // Predicated region
    $region6: #{tpu_custom_call.1} parent=1 // pred_check
      _
    $region7: #{tpu_custom_call.1} parent=1 // pred_check_branch
      %37 = sbr.rel (0) target = $region9
    $region8: #{tpu_custom_call.1} parent=1 // pred_region
      _
    $region9: #{tpu_custom_call.1} parent=1 // pred_fallthru
      _
    // Predicated region
    $region10: #{tpu_custom_call.1} parent=1 // pred_check
      _
    $region11: #{tpu_custom_call.1} parent=1 // pred_check_branch
      %39 = sbr.rel (0) target = $region13
    $region12: #{tpu_custom_call.1} parent=1 // pred_region
      _
    $region13: #{tpu_custom_call.1} parent=1 // pred_fallthru
      _
    // Predicated region
    $region14: #{tpu_custom_call.1} parent=1 // pred_check
      _
    $region15: #{tpu_custom_call.1} parent=1 // pred_check_branch
      %41 = sbr.rel (0) target = $region17
    $region16: #{tpu_custom_call.1} parent=1 // pred_region
      _
    $region17: #{tpu_custom_call.1} parent=1 // pred_fallthru
      _
    // Predicated region
    $region18: #{tpu_custom_call.1} parent=1 // pred_check
      _
    $region19: #{tpu_custom_call.1} parent=1 // pred_check_branch
      %43 = sbr.rel (0) target = $region21
    $region20: #{tpu_custom_call.1} parent=1 // pred_region
      _
    $region21: #{tpu_custom_call.1} parent=1 // pred_fallthru
      _
    // Predicated region
    $region22: #{tpu_custom_call.1} parent=1 // pred_check
      _
    $region23: #{tpu_custom_call.1} parent=1 // pred_check_branch
      %45 = sbr.rel (0) target = $region25
    $region24: #{tpu_custom_call.1} parent=1 // pred_region
      _
    $region25: #{tpu_custom_call.1} parent=1 // pred_fallthru
      _
    // Predicated region
    $region26: #{tpu_custom_call.1} parent=1 // pred_check
      _
    $region27: #{tpu_custom_call.1} parent=1 // pred_check_branch
      %47 = sbr.rel (0) target = $region29
    $region28: #{tpu_custom_call.1} parent=1 // pred_region
      _
    $region29: #{tpu_custom_call.1} parent=1 // pred_fallthru
      _
    // Predicated region
    $region30: #{tpu_custom_call.1} parent=1 // pred_check
      _
    $region31: #{tpu_custom_call.1} parent=1 // pred_check_branch
      %49 = sbr.rel (0) target = $region33
    $region32: #{tpu_custom_call.1} parent=1 // pred_region
      _
    $region33: #{tpu_custom_call.1} parent=1 // pred_fallthru
      _
    // Predicated region
    $region34: #{tpu_custom_call.1} parent=1 // pred_check
      _
    $region35: #{tpu_custom_call.1} parent=1 // pred_check_branch
      %51 = sbr.rel (0) target = $region37
    $region36: #{tpu_custom_call.1} parent=1 // pred_region
      %s53 = ssub.s32 16, 16
      %54 = vsyncadd [#allocation6], %s53
      %s56 = sshll.u32 [#allocation5], 4
      %s57 = int_to_ptr.vmem [resolvable:$true] %s56
      %59 = dma.hbm_to_vmem [thread:$0]  %s8, 16, %s57, [#allocation6]
    $region37: #{tpu_custom_call.1} parent=1 // pred_fallthru
      _
    // Predicated region
    $region38: #{tpu_custom_call.1} parent=1 // pred_check
      _
    $region39: #{tpu_custom_call.1} parent=1 // pred_check_branch
      %61 = sbr.rel (0) target = $region41
    $region40: #{tpu_custom_call.1} parent=1 // pred_region
      _
    $region41: #{tpu_custom_call.1} parent=1 // pred_fallthru
      _
    // Predicated region
    $region42: #{tpu_custom_call.1} parent=1 // pred_check
      _
    $region43: #{tpu_custom_call.1} parent=1 // pred_check_branch
      %63 = sbr.rel (0) target = $region45
    $region44: #{tpu_custom_call.1} parent=1 // pred_region
      %s65 = ssub.s32 16, 16
      %66 = vsyncadd [#allocation6], %s65
      %s68 = sshll.u32 [#allocation7], 4
      %s69 = int_to_ptr.vmem [resolvable:$true] %s68
      %71 = dma.hbm_to_vmem [thread:$0]  %s10, 16, %s69, [#allocation6]
    $region45: #{tpu_custom_call.1} parent=1 // pred_fallthru
      _
    // Predicated region
    $region46: #{tpu_custom_call.1} parent=1 // pred_check
      _
    $region47: #{tpu_custom_call.1} parent=1 // pred_check_branch
      %73 = sbr.rel (0) target = $region49
    $region48: #{tpu_custom_call.1} parent=1 // pred_region
      %s75 = ssub.s32 16, 16
      %76 = vsyncadd [#allocation9], %s75
      %s78 = sshll.u32 [#allocation8], 4
      %s79 = int_to_ptr.vmem [resolvable:$true] %s78
      %81 = dma.hbm_to_vmem [thread:$0]  %s11, 16, %s79, [#allocation9]
    $region49: #{tpu_custom_call.1} parent=1 // pred_fallthru
      _
    // Predicated region
    $region50: #{tpu_custom_call.1} parent=1 // pred_check
      _
    $region51: #{tpu_custom_call.1} parent=1 // pred_check_branch
      %83 = sbr.rel (0) target = $region53
    $region52: #{tpu_custom_call.1} parent=1 // pred_region
      _
    $region53: #{tpu_custom_call.1} parent=1 // pred_fallthru
      _
    // Predicated region
    $region54: #{tpu_custom_call.1} parent=1 // pred_check
      _
    $region55: #{tpu_custom_call.1} parent=1 // pred_check_branch
      %85 = sbr.rel (0) target = $region57
    $region56: #{tpu_custom_call.1} parent=1 // pred_region
      %s87 = ssub.s32 16, 16
      %88 = vsyncadd [#allocation9], %s87
      %s90 = sshll.u32 [#allocation10], 4
      %s91 = int_to_ptr.vmem [resolvable:$true] %s90
      %93 = dma.hbm_to_vmem [thread:$0]  %s13, 16, %s91, [#allocation9]
    $region57: #{tpu_custom_call.1} parent=1 // pred_fallthru
      _
    // Predicated region
    $region58: #{tpu_custom_call.1} parent=1 // pred_check
      _
    $region59: #{tpu_custom_call.1} parent=1 // pred_check_branch
      %95 = sbr.rel (0) target = $region61
    $region60: #{tpu_custom_call.1} parent=1 // pred_region
      %s97 = ssub.s32 256, 256
      %98 = vsyncadd [#allocation12], %s97
      %s99 = sshll.u32 [#allocation11], 4
      %s100 = int_to_ptr.vmem [resolvable:$true] %s99
      %105 = dma.hbm_to_vmem [thread:$0]  %s14, 256, %s100, [#allocation12], 64, 64, 4
    $region61: #{tpu_custom_call.1} parent=1 // pred_fallthru
      _
    // Predicated region
    $region62: #{tpu_custom_call.1} parent=1 // pred_check
      _
    $region63: #{tpu_custom_call.1} parent=1 // pred_check_branch
      %107 = sbr.rel (0) target = $region65
    $region64: #{tpu_custom_call.1} parent=1 // pred_region
      _
    $region65: #{tpu_custom_call.1} parent=1 // pred_fallthru
      _
    // Predicated region
    $region66: #{tpu_custom_call.1} parent=1 // pred_check
      _
    $region67: #{tpu_custom_call.1} parent=1 // pred_check_branch
      %109 = sbr.rel (0) target = $region69
    $region68: #{tpu_custom_call.1} parent=1 // pred_region
      %110 = dma.done [#allocation3], 256
    $region69: #{tpu_custom_call.1} parent=1 // pred_fallthru
      _
    // Predicated region
    $region70: #{tpu_custom_call.1} parent=1 // pred_check
      _
    $region71: #{tpu_custom_call.1} parent=1 // pred_check_branch
      %112 = sbr.rel (0) target = $region73
    $region72: #{tpu_custom_call.1} parent=1 // pred_region
      %113 = dma.done [#allocation6], 16
    $region73: #{tpu_custom_call.1} parent=1 // pred_fallthru
      _
    // Predicated region
    $region74: #{tpu_custom_call.1} parent=1 // pred_check
      _
    $region75: #{tpu_custom_call.1} parent=1 // pred_check_branch
      %115 = sbr.rel (0) target = $region77
    $region76: #{tpu_custom_call.1} parent=1 // pred_region
      %116 = dma.done [#allocation6], 16
    $region77: #{tpu_custom_call.1} parent=1 // pred_fallthru
      _
    // Predicated region
    $region78: #{tpu_custom_call.1} parent=1 // pred_check
      _
    $region79: #{tpu_custom_call.1} parent=1 // pred_check_branch
      %118 = sbr.rel (0) target = $region81
    $region80: #{tpu_custom_call.1} parent=1 // pred_region
      %119 = dma.done [#allocation9], 16
    $region81: #{tpu_custom_call.1} parent=1 // pred_fallthru
      _
    // Predicated region
    $region82: #{tpu_custom_call.1} parent=1 // pred_check
      _
    $region83: #{tpu_custom_call.1} parent=1 // pred_check_branch
      %121 = sbr.rel (0) target = $region85
    $region84: #{tpu_custom_call.1} parent=1 // pred_region
      %122 = dma.done [#allocation9], 16
    $region85: #{tpu_custom_call.1} parent=1 // pred_fallthru
      _
    // Predicated region
    $region86: #{tpu_custom_call.1} parent=1 // pred_check
      _
    $region87: #{tpu_custom_call.1} parent=1 // pred_check_branch
      %124 = sbr.rel (0) target = $region89
    $region88: #{tpu_custom_call.1} parent=1 // pred_region
      %125 = dma.done [#allocation12], 256
    $region89: #{tpu_custom_call.1} parent=1 // pred_fallthru
      _
    %v127 = vld [vmem:[#allocation2] sm:$0xff]
    %v128 = vld [vmem:[#allocation2 + $0x8] sm:$0xff]
    %v129 = vpack.c.bf16 %v127, %v127
    %v130 = vpack.c.bf16 %v128, %v128
    %v131 = vld [vmem:[%s1] sm:$0xf]
    %v132 = vld [vmem:[%s1 + $0x4] sm:$0xf]
    %v133 = vld [vmem:[%s1 + $0x8] sm:$0xf]
    %v134 = vld [vmem:[%s1 + $0xc] sm:$0xf]
    %v135 = vld [vmem:[%s1 + $0x10] sm:$0xf]
    %v136 = vld [vmem:[%s1 + $0x14] sm:$0xf]
    %v137 = vld [vmem:[%s1 + $0x18] sm:$0xf]
    %v138 = vld [vmem:[%s1 + $0x1c] sm:$0xf]
    %v139 = vld [vmem:[%s1 + $0x20] sm:$0xf]
    %v140 = vld [vmem:[%s1 + $0x24] sm:$0xf]
    %v141 = vld [vmem:[%s1 + $0x28] sm:$0xf]
    %v142 = vld [vmem:[%s1 + $0x2c] sm:$0xf]
    %v143 = vld [vmem:[%s1 + $0x30] sm:$0xf]
    %v144 = vld [vmem:[%s1 + $0x34] sm:$0xf]
    %v145 = vld [vmem:[%s1 + $0x38] sm:$0xf]
    %v146 = vld [vmem:[%s1 + $0x3c] sm:$0xf]
    %v147 = vld [vmem:[%s1 + $0x40] sm:$0xf]
    %v148 = vld [vmem:[%s1 + $0x44] sm:$0xf]
    %v149 = vld [vmem:[%s1 + $0x48] sm:$0xf]
    %v150 = vld [vmem:[%s1 + $0x4c] sm:$0xf]
    %v151 = vld [vmem:[%s1 + $0x50] sm:$0xf]
    %v152 = vld [vmem:[%s1 + $0x54] sm:$0xf]
    %v153 = vld [vmem:[%s1 + $0x58] sm:$0xf]
    %v154 = vld [vmem:[%s1 + $0x5c] sm:$0xf]
    %v155 = vld [vmem:[%s1 + $0x60] sm:$0xf]
    %v156 = vld [vmem:[%s1 + $0x64] sm:$0xf]
    %v157 = vld [vmem:[%s1 + $0x68] sm:$0xf]
    %v158 = vld [vmem:[%s1 + $0x6c] sm:$0xf]
    %v159 = vld [vmem:[%s1 + $0x70] sm:$0xf]
    %v160 = vld [vmem:[%s1 + $0x74] sm:$0xf]
    %v161 = vld [vmem:[%s1 + $0x78] sm:$0xf]
    %v162 = vld [vmem:[%s1 + $0x7c] sm:$0xf]
    %v163 = vld [vmem:[%s2] sm:$0x1]
    %v165 = vlaneseq
    %v166 = vshrl.u32 %v165, 7
    %v167 = vsub.s32 0, %v166
    %v168 = vrot.slane %v163, %v167
    %v202 = vunpack.c.l.b16 %v131
    %v203 = vunpack.c.l.b16 %v132
    %v204 = vunpack.c.l.b16 %v133
    %v205 = vunpack.c.l.b16 %v134
    %v206 = vunpack.c.l.b16 %v135
    %v207 = vunpack.c.l.b16 %v136
    %v208 = vunpack.c.l.b16 %v137
    %v209 = vunpack.c.l.b16 %v138
    %v210 = vunpack.c.l.b16 %v139
    %v211 = vunpack.c.l.b16 %v140
    %v212 = vunpack.c.l.b16 %v141
    %v213 = vunpack.c.l.b16 %v142
    %v214 = vunpack.c.l.b16 %v143
    %v215 = vunpack.c.l.b16 %v144
    %v216 = vunpack.c.l.b16 %v145
    %v217 = vunpack.c.l.b16 %v146
    %v218 = vunpack.c.l.b16 %v147
    %v219 = vunpack.c.l.b16 %v148
    %v220 = vunpack.c.l.b16 %v149
    %v221 = vunpack.c.l.b16 %v150
    %v222 = vunpack.c.l.b16 %v151
    %v223 = vunpack.c.l.b16 %v152
    %v224 = vunpack.c.l.b16 %v153
    %v225 = vunpack.c.l.b16 %v154
    %v226 = vunpack.c.l.b16 %v155
    %v227 = vunpack.c.l.b16 %v156
    %v228 = vunpack.c.l.b16 %v157
    %v229 = vunpack.c.l.b16 %v158
    %v230 = vunpack.c.l.b16 %v159
    %v231 = vunpack.c.l.b16 %v160
    %v232 = vunpack.c.l.b16 %v161
    %v233 = vunpack.c.l.b16 %v162
    %v234 = vpack.c.b16 %v203, %v202
    %v235 = vpack.c.b16 %v205, %v204
    %v236 = vpack.c.b16 %v207, %v206
    %v237 = vpack.c.b16 %v209, %v208
    %v238 = vpack.c.b16 %v211, %v210
    %v239 = vpack.c.b16 %v213, %v212
    %v240 = vpack.c.b16 %v215, %v214
    %v241 = vpack.c.b16 %v217, %v216
    %v242 = vpack.c.b16 %v219, %v218
    %v243 = vpack.c.b16 %v221, %v220
    %v244 = vpack.c.b16 %v223, %v222
    %v245 = vpack.c.b16 %v225, %v224
    %v246 = vpack.c.b16 %v227, %v226
    %v247 = vpack.c.b16 %v229, %v228
    %v248 = vpack.c.b16 %v231, %v230
    %v249 = vpack.c.b16 %v233, %v232
    %266 = vmatprep.subr.bf16.mxu0 0
    %267 = vmatpush1.bf16.msra.mxu0 %v241
    %268 = vmatprep.subr.bf16.mxu0 0
    %269 = vmatpush1.bf16.msra.mxu0 %v240
    %270 = vmatprep.subr.bf16.mxu0 0
    %271 = vmatpush1.bf16.msra.mxu0 %v239
    %272 = vmatprep.subr.bf16.mxu0 0
    %273 = vmatpush1.bf16.msra.mxu0 %v238
    %274 = vmatprep.subr.bf16.mxu0 0
    %275 = vmatpush1.bf16.msra.mxu0 %v237
    %276 = vmatprep.subr.bf16.mxu0 0
    %277 = vmatpush1.bf16.msra.mxu0 %v236
    %278 = vmatprep.subr.bf16.mxu0 0
    %279 = vmatpush1.bf16.msra.mxu0 %v235
    %280 = vmatprep.subr.bf16.mxu0 0
    %281 = vmatpush1.bf16.msra.mxu0 %v234
    %282 = vmatprep.subr.bf16.mxu0 0
    %283 = vmatpush2.bf16.msra.mxu0 %v249
    %284 = vmatprep.subr.bf16.mxu0 0
    %285 = vmatpush2.bf16.msra.mxu0 %v248
    %286 = vmatprep.subr.bf16.mxu0 0
    %287 = vmatpush2.bf16.msra.mxu0 %v247
    %288 = vmatprep.subr.bf16.mxu0 0
    %289 = vmatpush2.bf16.msra.mxu0 %v246
    %290 = vmatprep.subr.bf16.mxu0 0
    %291 = vmatpush2.bf16.msra.mxu0 %v245
    %292 = vmatprep.subr.bf16.mxu0 0
    %293 = vmatpush2.bf16.msra.mxu0 %v244
    %294 = vmatprep.subr.bf16.mxu0 0
    %295 = vmatpush2.bf16.msra.mxu0 %v243
    %296 = vmatprep.subr.bf16.mxu0 0
    %297 = vmatpush2.bf16.msra.mxu0 %v242
    %298 = vmatprep.mubr.bf16.mxu0 %v130
    %299 = vmatmul.mubr.bf16.gmra.mxu0 %v129
    %v300 = vpop.f32.mrf.mxu0
    %v301 = vadd.f32 %v168, %v300
    %v302 = vpop.f32.mrf.mxu0
    %v303 = vpop.f32.mrf.mxu0
    %v304 = vpop.f32.mrf.mxu0
    %305 = vdwg.mxu0
    %v306 = vld [vmem:[%s3] sm:$0x1]
    %v307 = vld [vmem:[%s4] sm:$0x1]
    %308 = vadd.xlane.f32.xlu0 %v301
    %v309 = vpop.xlane.xlu0 %308
    %v310 = vrcp.pop 128.0
    %v311 = vmul.f32 %v309, %v310
    %v312 = vmul.f32 %v301, %v301
    %313 = vadd.xlane.f32.xlu0 %v312
    %v314 = vpop.xlane.xlu0 %313
    %v315 = vmul.f32 %v314, %v310
    %v316 = vmul.f32 %v311, %v311
    %v317 = vsub.f32 %v315, %v316
    %v318 = vmax.f32 %v317, 0.0
    %v319 = vsub.f32 %v301, %v311
    %v320 = vadd.f32 %v318, 1e-05
    %v321 = vrsqrt.pop %v320
    %v322 = vmul.f32 %v319, %v321
    %v324 = vlaneseq
    %v325 = vshrl.u32 %v324, 7
    %v326 = vsub.s32 0, %v325
    %v327 = vrot.slane %v306, %v326
    %v329 = vmul.f32 %v322, %v327
    %v331 = vlaneseq
    %v332 = vshrl.u32 %v331, 7
    %v333 = vsub.s32 0, %v332
    %v334 = vrot.slane %v307, %v333
    %v336 = vadd.f32 %v329, %v334
    %vm337 = vcmp.gt.f32.partialorder %v336, 0.0
    %v338 = vmul.f32 %v336, 0.01
    %v339 = vsel %vm337, %v336, %v338
    %v340 = vpack.c.bf16 %v339, %v339
    %v341 = vld [vmem:[%s5] sm:$0xf]
    %v342 = vld [vmem:[%s5 + $0x4] sm:$0xf]
    %v343 = vld [vmem:[%s5 + $0x8] sm:$0xf]
    %v344 = vld [vmem:[%s5 + $0xc] sm:$0xf]
    %v345 = vld [vmem:[%s5 + $0x10] sm:$0xf]
    %v346 = vld [vmem:[%s5 + $0x14] sm:$0xf]
    %v347 = vld [vmem:[%s5 + $0x18] sm:$0xf]
    %v348 = vld [vmem:[%s5 + $0x1c] sm:$0xf]
    %v349 = vld [vmem:[%s5 + $0x20] sm:$0xf]
    %v350 = vld [vmem:[%s5 + $0x24] sm:$0xf]
    %v351 = vld [vmem:[%s5 + $0x28] sm:$0xf]
    %v352 = vld [vmem:[%s5 + $0x2c] sm:$0xf]
    %v353 = vld [vmem:[%s5 + $0x30] sm:$0xf]
    %v354 = vld [vmem:[%s5 + $0x34] sm:$0xf]
    %v355 = vld [vmem:[%s5 + $0x38] sm:$0xf]
    %v356 = vld [vmem:[%s5 + $0x3c] sm:$0xf]
    %v357 = vld [vmem:[%s6] sm:$0x1]
    %v359 = vlaneseq
    %v360 = vshrl.u32 %v359, 7
    %v361 = vsub.s32 0, %v360
    %v362 = vrot.slane %v357, %v361
    %v380 = vunpack.c.l.b16 %v341
    %v381 = vunpack.c.l.b16 %v342
    %v382 = vunpack.c.l.b16 %v343
    %v383 = vunpack.c.l.b16 %v344
    %v384 = vunpack.c.l.b16 %v345
    %v385 = vunpack.c.l.b16 %v346
    %v386 = vunpack.c.l.b16 %v347
    %v387 = vunpack.c.l.b16 %v348
    %v388 = vunpack.c.l.b16 %v349
    %v389 = vunpack.c.l.b16 %v350
    %v390 = vunpack.c.l.b16 %v351
    %v391 = vunpack.c.l.b16 %v352
    %v392 = vunpack.c.l.b16 %v353
    %v393 = vunpack.c.l.b16 %v354
    %v394 = vunpack.c.l.b16 %v355
    %v395 = vunpack.c.l.b16 %v356
    %v396 = vpack.c.b16 %v381, %v380
    %v397 = vpack.c.b16 %v383, %v382
    %v398 = vpack.c.b16 %v385, %v384
    %v399 = vpack.c.b16 %v387, %v386
    %v400 = vpack.c.b16 %v389, %v388
    %v401 = vpack.c.b16 %v391, %v390
    %v402 = vpack.c.b16 %v393, %v392
    %v403 = vpack.c.b16 %v395, %v394
    %412 = vmatprep.subr.bf16.mxu0 0
    %413 = vmatpush1.bf16.msra.mxu0 %v403
    %414 = vmatprep.subr.bf16.mxu0 0
    %415 = vmatpush1.bf16.msra.mxu0 %v402
    %416 = vmatprep.subr.bf16.mxu0 0
    %417 = vmatpush1.bf16.msra.mxu0 %v401
    %418 = vmatprep.subr.bf16.mxu0 0
    %419 = vmatpush1.bf16.msra.mxu0 %v400
    %420 = vmatprep.subr.bf16.mxu0 0
    %421 = vmatpush1.bf16.msra.mxu0 %v399
    %422 = vmatprep.subr.bf16.mxu0 0
    %423 = vmatpush1.bf16.msra.mxu0 %v398
    %424 = vmatprep.subr.bf16.mxu0 0
    %425 = vmatpush1.bf16.msra.mxu0 %v397
    %426 = vmatprep.subr.bf16.mxu0 0
    %427 = vmatpush1.bf16.msra.mxu0 %v396
    %428 = vmatprep.subr.bf16.mxu0 0
    %429 = vmatpush2.bf16.msra.mxu0 0
    %430 = vmatprep.subr.bf16.mxu0 0
    %431 = vmatpush2.bf16.msra.mxu0 0
    %432 = vmatprep.subr.bf16.mxu0 0
    %433 = vmatpush2.bf16.msra.mxu0 0
    %434 = vmatprep.subr.bf16.mxu0 0
    %435 = vmatpush2.bf16.msra.mxu0 0
    %436 = vmatprep.subr.bf16.mxu0 0
    %437 = vmatpush2.bf16.msra.mxu0 0
    %438 = vmatprep.subr.bf16.mxu0 0
    %439 = vmatpush2.bf16.msra.mxu0 0
    %440 = vmatprep.subr.bf16.mxu0 0
    %441 = vmatpush2.bf16.msra.mxu0 0
    %442 = vmatprep.subr.bf16.mxu0 0
    %443 = vmatpush2.bf16.msra.mxu0 0
    %444 = vmatprep.mubr.bf16.mxu0 0
    %445 = vmatmul.mubr.bf16.gmra.mxu0 %v340
    %v446 = vpop.f32.mrf.mxu0
    %v447 = vadd.f32 %v362, %v446
    %v448 = vpop.f32.mrf.mxu0
    %v449 = vpop.f32.mrf.mxu0
    %v450 = vpop.f32.mrf.mxu0
    %451 = vdwg.mxu0
    %v452 = vld [vmem:[%s7] sm:$0x1]
    %v453 = vld [vmem:[#allocation5] sm:$0x1]
    %vm454 = vcmask 523264
    %v455 = vsel %vm454, %v447, 0.0
    %456 = vadd.xlane.f32.xlu0 %v455
    %v457 = vpop.xlane.xlu0 %456
    %v458 = vrcp.pop 64.0
    %v459 = vmul.f32 %v457, %v458
    %v460 = vmul.f32 %v447, %v447
    %v461 = vsel %vm454, %v460, 0.0
    %462 = vadd.xlane.f32.xlu0 %v461
    %v463 = vpop.xlane.xlu0 %462
    %v464 = vmul.f32 %v463, %v458
    %v465 = vmul.f32 %v459, %v459
    %v466 = vsub.f32 %v464, %v465
    %v467 = vmax.f32 %v466, 0.0
    %v468 = vsub.f32 %v447, %v459
    %v469 = vadd.f32 %v467, 1e-05
    %v470 = vrsqrt.pop %v469
    %v471 = vmul.f32 %v468, %v470
    %v473 = vlaneseq
    %v474 = vshrl.u32 %v473, 7
    %v475 = vsub.s32 0, %v474
    %v476 = vrot.slane %v452, %v475
    %v478 = vmul.f32 %v471, %v476
    %v480 = vlaneseq
    %v481 = vshrl.u32 %v480, 7
    %v482 = vsub.s32 0, %v481
    %v483 = vrot.slane %v453, %v482
    %v485 = vadd.f32 %v478, %v483
    %vm486 = vcmp.gt.f32.partialorder %v485, 0.0
    %v487 = vmul.f32 %v485, 0.01
    %v488 = vsel %vm486, %v485, %v487
    %v489 = vpack.c.bf16 %v488, %v488
    %v490 = vld [vmem:[%s9] sm:$0xf]
    %v491 = vld [vmem:[%s9 + $0x4] sm:$0xf]
    %v492 = vld [vmem:[%s9 + $0x8] sm:$0xf]
    %v493 = vld [vmem:[%s9 + $0xc] sm:$0xf]
    %v494 = vld [vmem:[%s9 + $0x10] sm:$0xf]
    %v495 = vld [vmem:[%s9 + $0x14] sm:$0xf]
    %v496 = vld [vmem:[%s9 + $0x18] sm:$0xf]
    %v497 = vld [vmem:[%s9 + $0x1c] sm:$0xf]
    %v498 = vld [vmem:[#allocation7] sm:$0x1]
    %v500 = vlaneseq
    %v501 = vshrl.u32 %v500, 7
    %v502 = vsub.s32 0, %v501
    %v503 = vrot.slane %v498, %v502
    %v513 = vunpack.c.l.b16 %v490
    %v514 = vunpack.c.l.b16 %v491
    %v515 = vunpack.c.l.b16 %v492
    %v516 = vunpack.c.l.b16 %v493
    %v517 = vunpack.c.l.b16 %v494
    %v518 = vunpack.c.l.b16 %v495
    %v519 = vunpack.c.l.b16 %v496
    %v520 = vunpack.c.l.b16 %v497
    %v521 = vpack.c.b16 %v514, %v513
    %v522 = vpack.c.b16 %v516, %v515
    %v523 = vpack.c.b16 %v518, %v517
    %v524 = vpack.c.b16 %v520, %v519
    %v530 = vsel %vm454, %v489, 0
    %532 = vmatprep.subr.bf16.mxu0 0
    %533 = vmatpush1.bf16.msra.mxu0 0
    %534 = vmatprep.subr.bf16.mxu0 0
    %535 = vmatpush1.bf16.msra.mxu0 0
    %536 = vmatprep.subr.bf16.mxu0 0
    %537 = vmatpush1.bf16.msra.mxu0 0
    %538 = vmatprep.subr.bf16.mxu0 0
    %539 = vmatpush1.bf16.msra.mxu0 0
    %540 = vmatprep.subr.bf16.mxu0 0
    %541 = vmatpush1.bf16.msra.mxu0 %v524
    %542 = vmatprep.subr.bf16.mxu0 0
    %543 = vmatpush1.bf16.msra.mxu0 %v523
    %544 = vmatprep.subr.bf16.mxu0 0
    %545 = vmatpush1.bf16.msra.mxu0 %v522
    %546 = vmatprep.subr.bf16.mxu0 0
    %547 = vmatpush1.bf16.msra.mxu0 %v521
    %548 = vmatprep.subr.bf16.mxu0 0
    %549 = vmatpush2.bf16.msra.mxu0 0
    %550 = vmatprep.subr.bf16.mxu0 0
    %551 = vmatpush2.bf16.msra.mxu0 0
    %552 = vmatprep.subr.bf16.mxu0 0
    %553 = vmatpush2.bf16.msra.mxu0 0
    %554 = vmatprep.subr.bf16.mxu0 0
    %555 = vmatpush2.bf16.msra.mxu0 0
    %556 = vmatprep.subr.bf16.mxu0 0
    %557 = vmatpush2.bf16.msra.mxu0 0
    %558 = vmatprep.subr.bf16.mxu0 0
    %559 = vmatpush2.bf16.msra.mxu0 0
    %560 = vmatprep.subr.bf16.mxu0 0
    %561 = vmatpush2.bf16.msra.mxu0 0
    %562 = vmatprep.subr.bf16.mxu0 0
    %563 = vmatpush2.bf16.msra.mxu0 0
    %564 = vmatprep.mubr.bf16.mxu0 0
    %565 = vmatmul.mubr.bf16.gmra.mxu0 %v530
    %v566 = vpop.f32.mrf.mxu0
    %v567 = vadd.f32 %v503, %v566
    %v568 = vpop.f32.mrf.mxu0
    %v569 = vpop.f32.mrf.mxu0
    %v570 = vpop.f32.mrf.mxu0
    %571 = vdwg.mxu0
    %vm572 = vcmp.gt.f32.partialorder %v567, 0.0
    %v573 = vld [vmem:[#allocation8] sm:$0x1]
    %v575 = vlaneseq
    %v576 = vshrl.u32 %v575, 7
    %v577 = vsub.s32 0, %v576
    %v578 = vrot.slane %v573, %v577
    %v580 = vmul.f32 %v567, %v578
    %v581 = vsel %vm572, %v567, %v580
    %v582 = vpack.c.bf16 %v581, %v581
    %v583 = vld [vmem:[%s12] sm:$0xf]
    %v584 = vld [vmem:[%s12 + $0x4] sm:$0xf]
    %v585 = vld [vmem:[%s12 + $0x8] sm:$0xf]
    %v586 = vld [vmem:[%s12 + $0xc] sm:$0xf]
    %v587 = vld [vmem:[%s12 + $0x10] sm:$0xf]
    %v588 = vld [vmem:[%s12 + $0x14] sm:$0xf]
    %v589 = vld [vmem:[%s12 + $0x18] sm:$0xf]
    %v590 = vld [vmem:[%s12 + $0x1c] sm:$0xf]
    %v591 = vld [vmem:[%s12 + $0x20] sm:$0xf]
    %v592 = vld [vmem:[%s12 + $0x24] sm:$0xf]
    %v593 = vld [vmem:[%s12 + $0x28] sm:$0xf]
    %v594 = vld [vmem:[%s12 + $0x2c] sm:$0xf]
    %v595 = vld [vmem:[#allocation10] sm:$0x1]
    %v597 = vlaneseq
    %v598 = vshrl.u32 %v597, 7
    %v599 = vsub.s32 0, %v598
    %v600 = vrot.slane %v595, %v599
    %v614 = vunpack.c.l.b16 %v583
    %v615 = vunpack.c.l.b16 %v584
    %v616 = vunpack.c.l.b16 %v585
    %v617 = vunpack.c.l.b16 %v586
    %v618 = vunpack.c.l.b16 %v587
    %v619 = vunpack.c.l.b16 %v588
    %v620 = vunpack.c.l.b16 %v589
    %v621 = vunpack.c.l.b16 %v590
    %v622 = vunpack.c.l.b16 %v591
    %v623 = vunpack.c.l.b16 %v592
    %v624 = vunpack.c.l.b16 %v593
    %v625 = vunpack.c.l.b16 %v594
    %v626 = vpack.c.b16 %v615, %v614
    %v627 = vpack.c.b16 %v617, %v616
    %v628 = vpack.c.b16 %v619, %v618
    %v629 = vpack.c.b16 %v621, %v620
    %v630 = vpack.c.b16 %v623, %v622
    %v631 = vpack.c.b16 %v625, %v624
    %vm638 = vcmask 785408
    %v640 = vsel %vm638, %v582, 0
    %642 = vmatprep.subr.bf16.mxu0 0
    %643 = vmatpush1.bf16.msra.mxu0 0
    %644 = vmatprep.subr.bf16.mxu0 0
    %645 = vmatpush1.bf16.msra.mxu0 0
    %646 = vmatprep.subr.bf16.mxu0 0
    %647 = vmatpush1.bf16.msra.mxu0 %v631
    %648 = vmatprep.subr.bf16.mxu0 0
    %649 = vmatpush1.bf16.msra.mxu0 %v630
    %650 = vmatprep.subr.bf16.mxu0 0
    %651 = vmatpush1.bf16.msra.mxu0 %v629
    %652 = vmatprep.subr.bf16.mxu0 0
    %653 = vmatpush1.bf16.msra.mxu0 %v628
    %654 = vmatprep.subr.bf16.mxu0 0
    %655 = vmatpush1.bf16.msra.mxu0 %v627
    %656 = vmatprep.subr.bf16.mxu0 0
    %657 = vmatpush1.bf16.msra.mxu0 %v626
    %658 = vmatprep.subr.bf16.mxu0 0
    %659 = vmatpush2.bf16.msra.mxu0 0
    %660 = vmatprep.subr.bf16.mxu0 0
    %661 = vmatpush2.bf16.msra.mxu0 0
    %662 = vmatprep.subr.bf16.mxu0 0
    %663 = vmatpush2.bf16.msra.mxu0 0
    %664 = vmatprep.subr.bf16.mxu0 0
    %665 = vmatpush2.bf16.msra.mxu0 0
    %666 = vmatprep.subr.bf16.mxu0 0
    %667 = vmatpush2.bf16.msra.mxu0 0
    %668 = vmatprep.subr.bf16.mxu0 0
    %669 = vmatpush2.bf16.msra.mxu0 0
    %670 = vmatprep.subr.bf16.mxu0 0
    %671 = vmatpush2.bf16.msra.mxu0 0
    %672 = vmatprep.subr.bf16.mxu0 0
    %673 = vmatpush2.bf16.msra.mxu0 0
    %674 = vmatprep.mubr.bf16.mxu0 0
    %675 = vmatmul.mubr.bf16.gmra.mxu0 %v640
    %v676 = vpop.f32.mrf.mxu0
    %v677 = vadd.f32 %v600, %v676
    %v678 = vpop.f32.mrf.mxu0
    %v679 = vpop.f32.mrf.mxu0
    %v680 = vpop.f32.mrf.mxu0
    %681 = vdwg.mxu0
    %vm682 = vcmp.gt.f32.partialorder %v677, 0.0
    %v683 = vmul.f32 %v677, 0.01
    %v684 = vsel %vm682, %v677, %v683
    %v685 = vpack.c.bf16 %v684, %v684
    %v686 = vld [vmem:[#allocation11] sm:$0xf]
    %v687 = vld [vmem:[#allocation11 + $0x4] sm:$0xf]
    %v688 = vld [vmem:[#allocation11 + $0x8] sm:$0xf]
    %v689 = vld [vmem:[#allocation11 + $0xc] sm:$0xf]
    %v690 = vld [vmem:[%s15] sm:$0x1]
    %v692 = vlaneseq
    %v693 = vshrl.u32 %v692, 7
    %v694 = vsub.s32 0, %v693
    %v695 = vrot.slane %v690, %v694
    %v701 = vunpack.c.l.b16 %v686
    %v702 = vunpack.c.l.b16 %v687
    %v703 = vunpack.c.l.b16 %v688
    %v704 = vunpack.c.l.b16 %v689
    %v705 = vpack.c.b16 %v702, %v701
    %v706 = vpack.c.b16 %v704, %v703
    %vm709 = vcmask 261120
    %v711 = vsel %vm709, %v685, 0
    %713 = vmatprep.subr.bf16.mxu0 0
    %714 = vmatpush1.bf16.msra.mxu0 0
    %715 = vmatprep.subr.bf16.mxu0 0
    %716 = vmatpush1.bf16.msra.mxu0 0
    %717 = vmatprep.subr.bf16.mxu0 0
    %718 = vmatpush1.bf16.msra.mxu0 0
    %719 = vmatprep.subr.bf16.mxu0 0
    %720 = vmatpush1.bf16.msra.mxu0 0
    %721 = vmatprep.subr.bf16.mxu0 0
    %722 = vmatpush1.bf16.msra.mxu0 0
    %723 = vmatprep.subr.bf16.mxu0 0
    %724 = vmatpush1.bf16.msra.mxu0 0
    %725 = vmatprep.subr.bf16.mxu0 0
    %726 = vmatpush1.bf16.msra.mxu0 %v706
    %727 = vmatprep.subr.bf16.mxu0 0
    %728 = vmatpush1.bf16.msra.mxu0 %v705
    %729 = vmatprep.subr.bf16.mxu0 0
    %730 = vmatpush2.bf16.msra.mxu0 0
    %731 = vmatprep.subr.bf16.mxu0 0
    %732 = vmatpush2.bf16.msra.mxu0 0
    %733 = vmatprep.subr.bf16.mxu0 0
    %734 = vmatpush2.bf16.msra.mxu0 0
    %735 = vmatprep.subr.bf16.mxu0 0
    %736 = vmatpush2.bf16.msra.mxu0 0
    %737 = vmatprep.subr.bf16.mxu0 0
    %738 = vmatpush2.bf16.msra.mxu0 0
    %739 = vmatprep.subr.bf16.mxu0 0
    %740 = vmatpush2.bf16.msra.mxu0 0
    %741 = vmatprep.subr.bf16.mxu0 0
    %742 = vmatpush2.bf16.msra.mxu0 0
    %743 = vmatprep.subr.bf16.mxu0 0
    %744 = vmatpush2.bf16.msra.mxu0 0
    %745 = vmatprep.mubr.bf16.mxu0 0
    %746 = vmatmul.mubr.bf16.gmra.mxu0 %v711
    %v747 = vpop.f32.mrf.mxu0
    %v748 = vadd.f32 %v695, %v747
    %v749 = vpop.f32.mrf.mxu0
    %v750 = vpop.f32.mrf.mxu0
    %v751 = vpop.f32.mrf.mxu0
    %752 = vdwg.mxu0
    %v753 = vsub.f32 0.0, %v677
    %v754 = vmul.f32 %v753, 1.442695
    %v755 = vpow.pop %v754
    %v756 = vadd.f32 %v755, 1.0
    %v757 = vrcp.pop %v756
    %v758 = vmin.f32 %v757, 1.0
    %v759 = vlaneseq
    %v760 = vand.u32 %v759, 127
    %vm761 = vcmp.lt.s32.totalorder %v760, 10
    %vm762 = vcmp.lt.s32.totalorder %v760, 14
    %v763 = vsel %vm762, %v677, %v748
    %v764 = vsel %vm761, %v758, %v763
    %765 = vst.msk [vmem:[#allocation13] sm:$0xff] %vm709, %v764
    // Predicated region
    $region90: #{tpu_custom_call.1} parent=1 // pred_check
      _
    $region91: #{tpu_custom_call.1} parent=1 // pred_check_branch
      %767 = sbr.rel (0) target = $region93
    $region92: #{tpu_custom_call.1} parent=1 // pred_region
      %s769 = ssub.s32 128, 128
      %770 = vsyncadd [#allocation4], %s769
      %s772 = sshll.u32 [#allocation13], 4
      %s773 = int_to_ptr.vmem [resolvable:$true] %s772
      %775 = dma.vmem_to_hbm [thread:$0]  %s773, 128, %s16, [#allocation4]
    $region93: #{tpu_custom_call.1} parent=1 // pred_fallthru
      _
    // Predicated region
    $region94: #{tpu_custom_call.1} parent=1 // pred_check
      _
    $region95: #{tpu_custom_call.1} parent=1 // pred_check_branch
      %777 = sbr.rel (0) target = $region97
    $region96: #{tpu_custom_call.1} parent=1 // pred_region
      %778 = dma.done [#allocation4], 128
    $region97: #{tpu_custom_call.1} parent=1 // pred_fallthru
      _
    %779 = vsyncpa [#allocation3], 1
    %780 = vsyncpa [#allocation6], 1
    %781 = vsyncpa [#allocation9], 1
    %782 = vsyncpa [#allocation12], 1
    %783 = vsyncpa [#allocation4], 1

</llo_original>
